<compile_context>
chip_gen: v7x
topology: tpu7x:2x2x1
jax: 0.10.0
libtpu: 0.0.40
codegen_flags: <defaults>
</compile_context>

<pallas_src>
import functools
import math

import jax
import jax.numpy as jnp
from jax import lax
from jax.experimental import pallas as pl
from jax.experimental.pallas import tpu as pltpu


# --------------------------------------------------------------------------
# Kernels
# --------------------------------------------------------------------------
def _linconstr_kernel_direct(x_ref, w_ref, b_ref, o_ref, *, cast_dtype=None):
    """f32-output path: accumulate directly into the resident output block."""
    k = pl.program_id(2)

    @pl.when(k == 0)
    def _():
        # Initialize the output tile with the broadcast bias; subsequent k
        # steps accumulate partial products on top of it.
        o_ref[...] = jnp.broadcast_to(
            b_ref[...].astype(o_ref.dtype), o_ref.shape
        )

    # Clamp weight exactly like W.clamp(min=-1e6, max=1e6) in torch.
    w = jnp.clip(w_ref[...], -1.0e6, 1.0e6)
    x = x_ref[...]
    if cast_dtype is not None:
        w = w.astype(cast_dtype)
        x = x.astype(cast_dtype)

    # x tile: (tm, tk); w tile: (tn, tk) -> contract over K on the MXU
    # (transposed-RHS matmul, no XLU transpose, weight kept in [N, K]).
    o_ref[...] += lax.dot_general(
        x,
        w,
        dimension_numbers=(((1,), (1,)), ((), ())),
        preferred_element_type=jnp.float32,
    )


def _linconstr_kernel_scratch(x_ref, w_ref, b_ref, o_ref, acc_ref, *, cast_dtype=None):
    """Low-precision-output path: f32 VMEM accumulator, cast in the epilogue."""
    k = pl.program_id(2)

    @pl.when(k == 0)
    def _():
        acc_ref[...] = jnp.zeros_like(acc_ref)

    w = jnp.clip(w_ref[...], -1.0e6, 1.0e6)
    x = x_ref[...]
    if cast_dtype is not None:
        w = w.astype(cast_dtype)
        x = x.astype(cast_dtype)

    acc_ref[...] += lax.dot_general(
        x,
        w,
        dimension_numbers=(((1,), (1,)), ((), ())),
        preferred_element_type=jnp.float32,
    )

    @pl.when(k == pl.num_programs(2) - 1)
    def _():
        o_ref[...] = (acc_ref[...] + b_ref[...].astype(jnp.float32)).astype(o_ref.dtype)


# --------------------------------------------------------------------------
# Tiling helpers
# --------------------------------------------------------------------------
def _round_up(a, b):
    return ((a + b - 1) // b) * b


def _device_kind():
    try:
        return jax.devices()[0].device_kind.lower()
    except Exception:  # pragma: no cover
        return ""


def _default_tile_caps(kind):
    # v6e: 128 MiB physical VMEM -> 1024-class tiles cut x/W HBM re-reads 4x
    # vs 256 and make the MXU the limiter.
    if "v6" in kind:
        return 1024, 1024, 1024
    # v7x: 64 MiB physical / 32 MiB default scoped VMEM -> 512/512/1024
    # (~11-15 MiB double-buffered) uses the budget without risking OOM.
    # v5e: lowest HBM BW; same tiles, with vmem_limit_bytes raised below
    # because its scoped default is only 16 MiB.
    return 512, 512, 1024


def _pick_tile(dim, align, cap):
    """Largest power-of-two-ish tile (multiple of `align`, <= cap) that
    minimizes padding waste for `dim`."""
    cap = max(align, (cap // align) * align)
    if dim <= cap:
        return _round_up(dim, align)
    best_tile, best_pad = align, None
    cand = cap
    while cand >= align:
        pad = _round_up(dim, cand) - dim
        if best_pad is None or pad < best_pad:
            best_tile, best_pad = cand, pad
        cand //= 2
    return best_tile


# --------------------------------------------------------------------------
# Wrapper
# --------------------------------------------------------------------------
def linconstr_forward(x, weight, bias, *, tm=None, tn=None, tk=None,
                      use_bf16_compute=False):
    """x: [M, in_features]; weight: [out_features, in_features]; bias: [out_features]."""
    M, K = x.shape
    N, K2 = weight.shape
    assert K == K2, "weight in_features must match x"

    kind = _device_kind()
    cap_m, cap_n, cap_k = _default_tile_caps(kind)

    # Lane-dense (multiples of 128 on N/K), sublane-aligned (8) on M; picked
    # to minimize padding waste for awkward dims.
    if tm is None:
        tm = _pick_tile(M, 8, cap_m)
    if tn is None:
        tn = _pick_tile(N, 128, cap_n)
    if tk is None:
        tk = _pick_tile(K, 128, cap_k)

    Mp, Np, Kp = _round_up(M, tm), _round_up(N, tn), _round_up(K, tk)

    # v7x megacore: if both parallel axes collapse to a single tile, split N so
    # the second TensorCore has work.  No-op cost on single-TC v5e/v6e.
    if Mp // tm == 1 and Np // tn == 1 and tn >= 256:
        tn = tn // 2
        Np = _round_up(N, tn)

    # Zero padding is exact: clamp(0)=0 contributes nothing to the dot, and
    # padded output rows/cols are sliced off below.  Pad only when needed so
    # exact-fit shapes pay no extra HBM pass.
    # TODO(synk): for inference with static W, pre-pad/pre-clamp W once outside
    # the per-call hot path to skip this HBM pass entirely.
    xp = x if (Mp == M and Kp == K) else jnp.pad(x, ((0, Mp - M), (0, Kp - K)))
    wp = weight if (Np == N and Kp == K) else jnp.pad(weight, ((0, Np - N), (0, Kp - K)))
    bp = bias if Np == N else jnp.pad(bias, (0, Np - N))
    bp = bp.reshape(1, Np)

    grid = (Mp // tm, Np // tn, Kp // tk)

    out_dtype = x.dtype
    cast_dtype = jnp.bfloat16 if use_bf16_compute else None
    # Direct accumulation into o_ref is only exact when the output is f32.
    direct = (jnp.dtype(out_dtype) == jnp.dtype(jnp.float32))

    in_itemsize = jnp.dtype(x.dtype).itemsize
    out_itemsize = jnp.dtype(out_dtype).itemsize

    # Scoped-VMEM budget: double-buffered inputs + double-buffered output
    # (+ accumulator scratch on the non-f32 path) with ~50% headroom.  v5e's
    # default scoped limit is only 16 MiB, so raise it; cap below v7x's 64 MiB
    # physical VMEM.
    vmem_est = (
        2 * (tm * tk + tn * tk) * in_itemsize
        + 2 * tm * tn * out_itemsize
        + 2 * tn * in_itemsize
        + (0 if direct else tm * tn * 4)
    )
    vmem_cap = (56 << 20) if "v7" in kind else (100 << 20)
    vmem_limit = int(min(max(32 << 20, (vmem_est * 3) // 2), vmem_cap))

    cost = pl.CostEstimate(
        flops=2 * M * N * K,
        transcendentals=0,
        bytes_accessed=(M * K + N * K + N) * in_itemsize + M * N * out_itemsize,
    )

    if direct:
        kernel = functools.partial(_linconstr_kernel_direct, cast_dtype=cast_dtype)
        scratch_shapes = []
    else:
        kernel = functools.partial(_linconstr_kernel_scratch, cast_dtype=cast_dtype)
        scratch_shapes = [pltpu.VMEM((tm, tn), jnp.float32)]

    out = pl.pallas_call(
        kernel,
        out_shape=jax.ShapeDtypeStruct((Mp, Np), out_dtype),
        grid_spec=pltpu.PrefetchScalarGridSpec(
            num_scalar_prefetch=0,
            grid=grid,
            in_specs=[
                pl.BlockSpec((tm, tk), lambda i, j, k: (i, k)),   # x
                pl.BlockSpec((tn, tk), lambda i, j, k: (j, k)),   # weight (native [N, K])
                pl.BlockSpec((1, tn), lambda i, j, k: (0, j)),    # bias
            ],
            out_specs=pl.BlockSpec((tm, tn), lambda i, j, k: (i, j)),
            scratch_shapes=scratch_shapes,
        ),
        compiler_params=pltpu.CompilerParams(
            dimension_semantics=("parallel", "parallel", "arbitrary"),
            vmem_limit_bytes=vmem_limit,
        ),
        cost_estimate=cost,
    )(xp, wp, bp)

    if Mp == M and Np == N:
        return out
    return out[:M, :N]


# --------------------------------------------------------------------------
# Parameter init (mimics the torch module's __init__)
# --------------------------------------------------------------------------
def init_linconstr_params(key, in_features, out_features, dtype=jnp.float32):
    """kaiming_uniform_(a=sqrt(5)): bound = sqrt(6/((1+a^2)*fan_in)) = sqrt(1/fan_in);
    bias ~ U(-1/sqrt(fan_in), 1/sqrt(fan_in))."""
    kw, kb = jax.random.split(key)
    fan_in = in_features
    w_bound = math.sqrt(1.0 / fan_in)
    b_bound = 1.0 / math.sqrt(fan_in)
    weight = jax.random.uniform(
        kw, (out_features, in_features), dtype=dtype, minval=-w_bound, maxval=w_bound
    )
    bias = jax.random.uniform(
        kb, (out_features,), dtype=dtype, minval=-b_bound, maxval=b_bound
    )
    return weight, bias


def _reference(x, weight, bias):
    return x @ jnp.clip(weight, -1.0e6, 1.0e6).T + bias


if __name__ == "__main__":
    key = jax.random.PRNGKey(0)
    k_x, k_p, k_x2, k_p2 = jax.random.split(key, 4)

    # Small shapes consistent with the module (batch=8, hidden=32).
    batch, in_features, out_features = 8, 32, 32
    x = jax.random.normal(k_x, (batch, in_features), dtype=jnp.float32)
    weight, bias = init_linconstr_params(k_p, in_features, out_features)

    y = jax.block_until_ready(linconstr_forward(x, weight, bias))
    y_ref = _reference(x, weight, bias)
    assert y.shape == y_ref.shape, "shape mismatch vs reference"
    assert jnp.allclose(y, y_ref, atol=1e-5, rtol=1e-5), "mismatch vs reference"

    # Second check with non-aligned dims to exercise the padding / tiling path.
    M2, K2, N2 = 100, 192, 160
    x2 = jax.random.normal(k_x2, (M2, K2), dtype=jnp.float32)
    w2, b2 = init_linconstr_params(k_p2, K2, N2)
    y2 = jax.block_until_ready(linconstr_forward(x2, w2, b2))
    y2_ref = _reference(x2, w2, b2)
    assert y2.shape == y2_ref.shape, "shape mismatch vs reference (case 2)"
    assert jnp.allclose(y2, y2_ref, atol=1e-4, rtol=1e-4), "mismatch vs reference (case 2)"

    print("KERNEL_OK")
</pallas_src>

<mosaic_0001>
module attributes {stable_mosaic.version = 11 : i64} {
  func.func @_linconstr_kernel_direct(%arg0: i32, %arg1: i32, %arg2: i32, %arg3: memref<8x128xf32, #tpu.memory_space<vmem>>, %arg4: memref<128x128xf32, #tpu.memory_space<vmem>>, %arg5: memref<1x128xf32, #tpu.memory_space<vmem>>, %arg6: memref<8x128xf32, #tpu.memory_space<vmem>>) attributes {dimension_semantics = [#tpu.dimension_semantics<parallel>, #tpu.dimension_semantics<parallel>, #tpu.dimension_semantics<arbitrary>], iteration_bounds = array<i64: 1, 1, 1>, scalar_prefetch = 0 : i64, scratch_operands = 0 : i64, tpu.core_type = #tpu.core_type<tc>, window_params = [{transform_indices = @transform_0, window_bounds = array<i64: 8, 128>}, {transform_indices = @transform_1, window_bounds = array<i64: 128, 128>}, {transform_indices = @transform_2, window_bounds = array<i64: 1, 128>}, {transform_indices = @transform_3, window_bounds = array<i64: 8, 128>}]} {
    %c0_i32 = arith.constant 0 : i32
    %0 = arith.cmpi eq, %arg2, %c0_i32 : i32
    %1 = arith.extui %0 : i1 to i32
    %c0_i32_0 = arith.constant 0 : i32
    %2 = arith.cmpi ne, %1, %c0_i32_0 : i32
    scf.if %2 {
      %c0_10 = arith.constant 0 : index
      %c0_11 = arith.constant 0 : index
      %13 = vector.load %arg5[%c0_10, %c0_11] : memref<1x128xf32, #tpu.memory_space<vmem>>, vector<1x128xf32>
      %14 = vector.shape_cast %13 : vector<1x128xf32> to vector<1x128xf32>
      %15 = vector.broadcast %14 : vector<1x128xf32> to vector<8x128xf32>
      %c0_12 = arith.constant 0 : index
      %c0_13 = arith.constant 0 : index
      %16 = vector.load %arg6[%c0_12, %c0_13] : memref<8x128xf32, #tpu.memory_space<vmem>>, vector<8x128xf32>
      tpu.vector_store %arg6[%c0_12, %c0_13], %15 {strides = array<i32>} : memref<8x128xf32, #tpu.memory_space<vmem>>, vector<8x128xf32>,
    } else {
    }
    %c0 = arith.constant 0 : index
    %c0_1 = arith.constant 0 : index
    %3 = vector.load %arg4[%c0, %c0_1] : memref<128x128xf32, #tpu.memory_space<vmem>>, vector<128x128xf32>
    %cst = arith.constant -1.000000e+06 : f32
    %cst_2 = arith.constant 1.000000e+06 : f32
    %4 = vector.broadcast %cst : f32 to vector<128x128xf32>
    %5 = arith.maximumf %4, %3 : vector<128x128xf32>
    %6 = vector.broadcast %cst_2 : f32 to vector<128x128xf32>
    %7 = arith.minimumf %6, %5 : vector<128x128xf32>
    %c0_3 = arith.constant 0 : index
    %c0_4 = arith.constant 0 : index
    %8 = vector.load %arg3[%c0_3, %c0_4] : memref<8x128xf32, #tpu.memory_space<vmem>>, vector<8x128xf32>
    %c0_5 = arith.constant 0 : index
    %c0_6 = arith.constant 0 : index
    %9 = vector.load %arg6[%c0_5, %c0_6] : memref<8x128xf32, #tpu.memory_space<vmem>>, vector<8x128xf32>
    %cst_7 = arith.constant dense<0.000000e+00> : vector<8x128xf32>
    %10 = tpu.matmul %8, %7, %cst_7 {dimension_numbers = #tpu.dot_dimension_numbers<[1], [1], [0], [0], [0, 0, 1, 0], [], []>} : vector<8x128xf32>, vector<128x128xf32>, vector<8x128xf32> -> vector<8x128xf32>
    %11 = arith.addf %9, %10 : vector<8x128xf32>
    %c0_8 = arith.constant 0 : index
    %c0_9 = arith.constant 0 : index
    %12 = vector.load %arg6[%c0_8, %c0_9] : memref<8x128xf32, #tpu.memory_space<vmem>>, vector<8x128xf32>
    tpu.vector_store %arg6[%c0_8, %c0_9], %11 {strides = array<i32>} : memref<8x128xf32, #tpu.memory_space<vmem>>, vector<8x128xf32>,
    return
  }
  func.func @transform_0(%arg0: i32, %arg1: i32, %arg2: i32) -> (i32, i32) {
    %c0_i32 = arith.constant 0 : i32
    return %arg0, %arg2 : i32, i32
  }
  func.func @transform_1(%arg0: i32, %arg1: i32, %arg2: i32) -> (i32, i32) {
    %c0_i32 = arith.constant 0 : i32
    return %arg1, %arg2 : i32, i32
  }
  func.func @transform_2(%arg0: i32, %arg1: i32, %arg2: i32) -> (i32, i32) {
    %c0_i32 = arith.constant 0 : i32
    %c0_i32_0 = arith.constant 0 : i32
    return %c0_i32, %arg1 : i32, i32
  }
  func.func @transform_3(%arg0: i32, %arg1: i32, %arg2: i32) -> (i32, i32) {
    %c0_i32 = arith.constant 0 : i32
    return %arg0, %arg1 : i32, i32
  }
}

</mosaic_0001>

<llo_original>
// kernel: tpu_custom_call.1
$region0: #{tpu_custom_call.1}
  #allocation0 [shape = 'u32[]', space=smem, size = 0x4, offset = 0x4, fixed_abs, tag = 'smem constant byte address 0x4 - core index']
  #allocation1 [shape = 'u32[144,128]{1,0:T(1,128)}', space=vmem, size = 0x12000, scoped, tag = 'internal scratch']
  %s0 = inlined_call_operand.hbm [shape: f32[8,128], index: 0, kind: input, shape index: {}]
  %s1 = inlined_call_operand.hbm [shape: f32[128,128], index: 1, kind: input, shape index: {}]
  %s2 = inlined_call_operand.vmem [shape: f32[1,128], index: 2, kind: input, shape index: {}]
  %s3 = inlined_call_operand.hbm [shape: f32[8,128], index: 3, kind: output, shape index: {}]
  %s4 = sld [smem:[#allocation0]]
  $region34: #{tpu_custom_call.1} parent=0
    _
  %s6 = ssub.s32 1, %s4
  %s7 = scalar_select 0, %s6, %s4
  $region1: #{tpu_custom_call.1} parent=0
    #allocation2 [shape = 'u8[4096]{0}', space=vmem, size = 0x1000, scoped, tag = 'input window, operand 0, single buffered']
    #allocation3 [shape = 's32[1]{0}', space=sflag, size = 0x4, scoped, tag = 'scoped memory for tpu_custom_call.1']
    #allocation4 [shape = 's32[1]{0}', space=sflag, size = 0x4, scoped, tag = 'scoped memory for tpu_custom_call.1']
    #allocation5 [shape = 'u8[65536]{0}', space=vmem, size = 0x10000, scoped, tag = 'input window, operand 1, single buffered']
    #allocation6 [shape = 's32[1]{0}', space=sflag, size = 0x4, scoped, tag = 'scoped memory for tpu_custom_call.1']
    #allocation7 [shape = 'u8[4096]{0}', space=vmem, size = 0x1000, scoped, tag = 'output window, operand 0, single buffered']
    %8 = vsyncpa [#allocation3], 0
    %9 = vsyncpa [#allocation6], 0
    %10 = vsyncpa [#allocation4], 0
    // Predicated region
    $region2: #{tpu_custom_call.1} parent=1 // pred_check
      _
    $region3: #{tpu_custom_call.1} parent=1 // pred_check_branch
      %12 = sbr.rel (0) target = $region5
    $region4: #{tpu_custom_call.1} parent=1 // pred_region
      %s14 = ssub.s32 128, 128
      %15 = vsyncadd [#allocation3], %s14
      %s17 = sshll.u32 [#allocation2], 4
      %s18 = int_to_ptr.vmem [resolvable:$true] %s17
      %20 = dma.hbm_to_vmem [thread:$0]  %s0, 128, %s18, [#allocation3]
    $region5: #{tpu_custom_call.1} parent=1 // pred_fallthru
      _
    // Predicated region
    $region6: #{tpu_custom_call.1} parent=1 // pred_check
      _
    $region7: #{tpu_custom_call.1} parent=1 // pred_check_branch
      %22 = sbr.rel (0) target = $region9
    $region8: #{tpu_custom_call.1} parent=1 // pred_region
      %s24 = ssub.s32 2048, 2048
      %25 = vsyncadd [#allocation6], %s24
      %s26 = sshll.u32 [#allocation5], 4
      %s27 = int_to_ptr.vmem [resolvable:$true] %s26
      %32 = dma.hbm_to_vmem [thread:$0]  %s1, 2048, %s27, [#allocation6], 128, 128, 8
    $region9: #{tpu_custom_call.1} parent=1 // pred_fallthru
      _
    // Predicated region
    $region10: #{tpu_custom_call.1} parent=1 // pred_check
      _
    $region11: #{tpu_custom_call.1} parent=1 // pred_check_branch
      %34 = sbr.rel (0) target = $region13
    $region12: #{tpu_custom_call.1} parent=1 // pred_region
      _
    $region13: #{tpu_custom_call.1} parent=1 // pred_fallthru
      _
    // Predicated region
    $region14: #{tpu_custom_call.1} parent=1 // pred_check
      _
    $region15: #{tpu_custom_call.1} parent=1 // pred_check_branch
      %36 = sbr.rel (0) target = $region17
    $region16: #{tpu_custom_call.1} parent=1 // pred_region
      %37 = dma.done [#allocation3], 128
    $region17: #{tpu_custom_call.1} parent=1 // pred_fallthru
      _
    // Predicated region
    $region18: #{tpu_custom_call.1} parent=1 // pred_check
      _
    $region19: #{tpu_custom_call.1} parent=1 // pred_check_branch
      %39 = sbr.rel (0) target = $region21
    $region20: #{tpu_custom_call.1} parent=1 // pred_region
      %40 = dma.done [#allocation6], 2048
    $region21: #{tpu_custom_call.1} parent=1 // pred_fallthru
      _
    %p41 = scmp.eq.s32.totalorder 0, 0
    // Predicated region
    $region22: #{tpu_custom_call.1} parent=1 // pred_check
      %p42 = pneg %p41
    $region23: #{tpu_custom_call.1} parent=1 // pred_check_branch
      %44 = sbr.rel (%p42) target = $region25
    $region24: #{tpu_custom_call.1} parent=1 // pred_region
      %v45 = vld [vmem:[%s2] sm:$0x1]
      %v47 = vlaneseq
      %v48 = vshrl.u32 %v47, 7
      %v49 = vsub.s32 0, %v48
      %v50 = vrot.slane %v45, %v49
      %52 = vst [vmem:[#allocation7] sm:$0xff] %v50
    $region25: #{tpu_custom_call.1} parent=1 // pred_fallthru
      _
    %v53 = vld [vmem:[#allocation5] sm:$0xff]
    %v54 = vld [vmem:[#allocation5 + $0x8] sm:$0xff]
    %v55 = vld [vmem:[#allocation5 + $0x10] sm:$0xff]
    %v56 = vld [vmem:[#allocation5 + $0x18] sm:$0xff]
    %v57 = vld [vmem:[#allocation5 + $0x20] sm:$0xff]
    %v58 = vld [vmem:[#allocation5 + $0x28] sm:$0xff]
    %v59 = vld [vmem:[#allocation5 + $0x30] sm:$0xff]
    %v60 = vld [vmem:[#allocation5 + $0x38] sm:$0xff]
    %v61 = vld [vmem:[#allocation5 + $0x40] sm:$0xff]
    %v62 = vld [vmem:[#allocation5 + $0x48] sm:$0xff]
    %v63 = vld [vmem:[#allocation5 + $0x50] sm:$0xff]
    %v64 = vld [vmem:[#allocation5 + $0x58] sm:$0xff]
    %v65 = vld [vmem:[#allocation5 + $0x60] sm:$0xff]
    %v66 = vld [vmem:[#allocation5 + $0x68] sm:$0xff]
    %v67 = vld [vmem:[#allocation5 + $0x70] sm:$0xff]
    %v68 = vld [vmem:[#allocation5 + $0x78] sm:$0xff]
    %v69 = vmax.f32 %v53, -1000000.0
    %v70 = vmax.f32 %v54, -1000000.0
    %v71 = vmax.f32 %v55, -1000000.0
    %v72 = vmax.f32 %v56, -1000000.0
    %v73 = vmax.f32 %v57, -1000000.0
    %v74 = vmax.f32 %v58, -1000000.0
    %v75 = vmax.f32 %v59, -1000000.0
    %v76 = vmax.f32 %v60, -1000000.0
    %v77 = vmax.f32 %v61, -1000000.0
    %v78 = vmax.f32 %v62, -1000000.0
    %v79 = vmax.f32 %v63, -1000000.0
    %v80 = vmax.f32 %v64, -1000000.0
    %v81 = vmax.f32 %v65, -1000000.0
    %v82 = vmax.f32 %v66, -1000000.0
    %v83 = vmax.f32 %v67, -1000000.0
    %v84 = vmax.f32 %v68, -1000000.0
    %v85 = vmin.f32 %v69, 1000000.0
    %v86 = vmin.f32 %v70, 1000000.0
    %v87 = vmin.f32 %v71, 1000000.0
    %v88 = vmin.f32 %v72, 1000000.0
    %v89 = vmin.f32 %v73, 1000000.0
    %v90 = vmin.f32 %v74, 1000000.0
    %v91 = vmin.f32 %v75, 1000000.0
    %v92 = vmin.f32 %v76, 1000000.0
    %v93 = vmin.f32 %v77, 1000000.0
    %v94 = vmin.f32 %v78, 1000000.0
    %v95 = vmin.f32 %v79, 1000000.0
    %v96 = vmin.f32 %v80, 1000000.0
    %v97 = vmin.f32 %v81, 1000000.0
    %v98 = vmin.f32 %v82, 1000000.0
    %v99 = vmin.f32 %v83, 1000000.0
    %v100 = vmin.f32 %v84, 1000000.0
    %v101 = vld [vmem:[#allocation2] sm:$0xff]
    %v102 = vld [vmem:[#allocation7] sm:$0xff]
    %103 = vmatprep.subr.mxu0 0.0
    %104 = vmatpush1.xpose.msra.mxu0 %v85
    %105 = vmatprep.subr.mxu0 0.0
    %106 = vmatpush1.xpose.msra.mxu0 %v86
    %107 = vmatprep.subr.mxu0 0.0
    %108 = vmatpush1.xpose.msra.mxu0 %v87
    %109 = vmatprep.subr.mxu0 0.0
    %110 = vmatpush1.xpose.msra.mxu0 %v88
    %111 = vmatprep.subr.mxu0 0.0
    %112 = vmatpush1.xpose.msra.mxu0 %v89
    %113 = vmatprep.subr.mxu0 0.0
    %114 = vmatpush1.xpose.msra.mxu0 %v90
    %115 = vmatprep.subr.mxu0 0.0
    %116 = vmatpush1.xpose.msra.mxu0 %v91
    %117 = vmatprep.subr.mxu0 0.0
    %118 = vmatpush1.xpose.msra.mxu0 %v92
    %119 = vmatprep.subr.mxu0 0.0
    %120 = vmatpush1.xpose.msra.mxu0 %v93
    %121 = vmatprep.subr.mxu0 0.0
    %122 = vmatpush1.xpose.msra.mxu0 %v94
    %123 = vmatprep.subr.mxu0 0.0
    %124 = vmatpush1.xpose.msra.mxu0 %v95
    %125 = vmatprep.subr.mxu0 0.0
    %126 = vmatpush1.xpose.msra.mxu0 %v96
    %127 = vmatprep.subr.mxu0 0.0
    %128 = vmatpush1.xpose.msra.mxu0 %v97
    %129 = vmatprep.subr.mxu0 0.0
    %130 = vmatpush1.xpose.msra.mxu0 %v98
    %131 = vmatprep.subr.mxu0 0.0
    %132 = vmatpush1.xpose.msra.mxu0 %v99
    %133 = vmatprep.subr.mxu0 0.0
    %134 = vmatpush1.xpose.msra.mxu0 %v100
    %135 = vmatprep.subr.mxu0 0.0
    %136 = vmatpush1.xpose.msra.mxu0 0.0
    %137 = vmatprep.subr.mxu0 0.0
    %138 = vmatpush1.xpose.msra.mxu0 0.0
    %139 = vmatprep.subr.mxu0 0.0
    %140 = vmatpush1.xpose.msra.mxu0 0.0
    %141 = vmatprep.subr.mxu0 0.0
    %142 = vmatpush1.xpose.msra.mxu0 0.0
    %143 = vmatprep.subr.mxu0 0.0
    %144 = vmatpush1.xpose.msra.mxu0 0.0
    %145 = vmatprep.subr.mxu0 0.0
    %146 = vmatpush1.xpose.msra.mxu0 0.0
    %147 = vmatprep.subr.mxu0 0.0
    %148 = vmatpush1.xpose.msra.mxu0 0.0
    %149 = vmatprep.subr.mxu0 0.0
    %150 = vmatpush1.xpose.msra.mxu0 0.0
    %151 = vmatprep.subr.mxu0 0.0
    %152 = vmatpush1.xpose.msra.mxu0 0.0
    %153 = vmatprep.subr.mxu0 0.0
    %154 = vmatpush1.xpose.msra.mxu0 0.0
    %155 = vmatprep.subr.mxu0 0.0
    %156 = vmatpush1.xpose.msra.mxu0 0.0
    %157 = vmatprep.subr.mxu0 0.0
    %158 = vmatpush1.xpose.msra.mxu0 0.0
    %159 = vmatprep.subr.mxu0 0.0
    %160 = vmatpush1.xpose.msra.mxu0 0.0
    %161 = vmatprep.subr.mxu0 0.0
    %162 = vmatpush1.xpose.msra.mxu0 0.0
    %163 = vmatprep.subr.mxu0 0.0
    %164 = vmatpush1.xpose.msra.mxu0 0.0
    %165 = vmatprep.subr.mxu0 0.0
    %166 = vmatpush1.xpose.msra.mxu0 0.0
    %167 = vmatprep.mubr.f32.mxu0 0.0
    %168 = vmatmul.mubr.f32.gmra.mrb[0].mxu0 %v101
    %v169 = vpop.f32.mrb[0].mxu0
    %v170 = vadd.f32 0.0, %v169
    %v171 = vpop.f32.mrb[0].mxu0
    %172 = vdwg.mxu0
    %v173 = vadd.f32 %v102, %v170
    %174 = vst [vmem:[#allocation7] sm:$0xff] %v173
    // Predicated region
    $region26: #{tpu_custom_call.1} parent=1 // pred_check
      _
    $region27: #{tpu_custom_call.1} parent=1 // pred_check_branch
      %176 = sbr.rel (0) target = $region29
    $region28: #{tpu_custom_call.1} parent=1 // pred_region
      %s178 = ssub.s32 128, 128
      %179 = vsyncadd [#allocation4], %s178
      %s181 = sshll.u32 [#allocation7], 4
      %s182 = int_to_ptr.vmem [resolvable:$true] %s181
      %184 = dma.vmem_to_hbm [thread:$0]  %s182, 128, %s3, [#allocation4]
    $region29: #{tpu_custom_call.1} parent=1 // pred_fallthru
      _
    // Predicated region
    $region30: #{tpu_custom_call.1} parent=1 // pred_check
      _
    $region31: #{tpu_custom_call.1} parent=1 // pred_check_branch
      %186 = sbr.rel (0) target = $region33
    $region32: #{tpu_custom_call.1} parent=1 // pred_region
      %187 = dma.done [#allocation4], 128
    $region33: #{tpu_custom_call.1} parent=1 // pred_fallthru
      _
    %188 = vsyncpa [#allocation3], 1
    %189 = vsyncpa [#allocation6], 1
    %190 = vsyncpa [#allocation4], 1

</llo_original>
